<compile_context>
chip_gen: v5e
topology: v5e:2x2
jax: 0.10.0
libtpu: 0.0.40
codegen_flags: <defaults>
</compile_context>

<pallas_src>
import functools

import jax
import jax.numpy as jnp
import numpy as np
from jax.experimental import pallas as pl
from jax.experimental.pallas import tpu as pltpu

SQRT_2PI = (2.0 * 3.14159) ** 0.5  # match the torch.jit.script constant exactly


def gaussian_kernel(y_ref, mean_ref, a_ref, coeff_ref, o_ref):
    # y_ref:     [TM, 1]  pre-affined distances (mul*x + bias)
    # mean_ref:  [1,  K]
    # a_ref:     [1,  K]  = 1 / ((|std|+0.01) * sqrt(2))
    # coeff_ref: [1,  K]  = 1 / (sqrt(2*pi) * (|std|+0.01))
    # o_ref:     [TM, K]
    t = (y_ref[...] - mean_ref[...]) * a_ref[...]       # broadcast -> [TM, K]
    o_ref[...] = jnp.exp(-(t * t)) * coeff_ref[...]      # exp on EUP, muls on VPU


@functools.partial(jax.jit, static_argnames=("K", "tile_m"))
def gaussian_layer(x, edge_types, mul_w, bias_w, means_w, stds_w, *, K=128, tile_m=2048):
    B, N1, N2 = x.shape
    T = edge_types.shape[-1]
    M = B * N1 * N2

    # --- glue: embedding gather + T-sum + affine (data-dependent indexing, O(M*T)) ---
    et = edge_types.reshape(M, T)
    mul = jnp.take(mul_w[:, 0].astype(jnp.float32), et, axis=0).sum(axis=-1)    # [M]
    bias = jnp.take(bias_w[:, 0].astype(jnp.float32), et, axis=0).sum(axis=-1)  # [M]
    y = (mul * x.reshape(M).astype(jnp.float32) + bias).reshape(M, 1)           # [M, 1]

    # --- glue: std-dependent constants, exact divides on K elements only ---
    mean2d = means_w.reshape(1, K).astype(jnp.float32)
    std2d = jnp.abs(stds_w.reshape(1, K).astype(jnp.float32)) + 0.01
    a2d = 1.0 / (std2d * jnp.sqrt(jnp.float32(2.0)))
    coeff2d = 1.0 / (SQRT_2PI * std2d)

    # --- tiling: large lane-dense output tiles; shrink/pad the row axis as needed ---
    tile_m = max(8, (tile_m // 8) * 8)
    if M < tile_m:
        tile_m_eff = max(8, ((M + 7) // 8) * 8)
    else:
        tile_m_eff = tile_m
    M_pad = ((M + tile_m_eff - 1) // tile_m_eff) * tile_m_eff
    if M_pad != M:
        y = jnp.concatenate([y, jnp.zeros((M_pad - M, 1), jnp.float32)], axis=0)

    grid = (M_pad // tile_m_eff,)
    out = pl.pallas_call(
        gaussian_kernel,
        out_shape=jax.ShapeDtypeStruct((M_pad, K), jnp.float32),
        grid_spec=pltpu.PrefetchScalarGridSpec(
            num_scalar_prefetch=0,
            grid=grid,
            in_specs=[
                pl.BlockSpec((tile_m_eff, 1), lambda i: (i, 0)),
                pl.BlockSpec((1, K), lambda i: (0, 0)),
                pl.BlockSpec((1, K), lambda i: (0, 0)),
                pl.BlockSpec((1, K), lambda i: (0, 0)),
            ],
            out_specs=pl.BlockSpec((tile_m_eff, K), lambda i: (i, 0)),
        ),
        compiler_params=pltpu.CompilerParams(dimension_semantics=("parallel",)),
        cost_estimate=pl.CostEstimate(
            flops=4 * M_pad * K,
            transcendentals=M_pad * K,
            bytes_accessed=M_pad * K * 4 + M_pad * 4 + 3 * K * 4,
        ),
    )(y, mean2d, a2d, coeff2d)

    if M_pad != M:
        out = out[:M]
    # output dtype follows means.weight dtype (float32 here), like .type_as(...)
    return out.reshape(B, N1, N2, K)


def reference(x, edge_types, mul_w, bias_w, means_w, stds_w, K=128):
    mul = mul_w[edge_types].sum(axis=-2)    # [B,N,N,1]
    bias = bias_w[edge_types].sum(axis=-2)  # [B,N,N,1]
    y = mul * x[..., None] + bias           # [B,N,N,1]
    y = jnp.broadcast_to(y, y.shape[:-1] + (K,)).astype(jnp.float32)
    mean = means_w.reshape(-1).astype(jnp.float32)
    std = jnp.abs(stds_w.reshape(-1).astype(jnp.float32)) + 0.01
    return jnp.exp(-0.5 * ((y - mean) / std) ** 2) / (SQRT_2PI * std)


if __name__ == "__main__":
    K = 128
    EDGE_TYPES = 512 * 3
    B, N, T = 2, 8, 3

    key = jax.random.PRNGKey(0)
    k_means, k_stds, k_x, k_et = jax.random.split(key, 4)

    # Deterministic parameter init mirroring the module's __init__:
    #   means, stds ~ U(0, 3); mul.weight = 1; bias.weight = 0
    means_w = jax.random.uniform(k_means, (1, K), jnp.float32, 0.0, 3.0)
    stds_w = jax.random.uniform(k_stds, (1, K), jnp.float32, 0.0, 3.0)
    mul_w = jnp.ones((EDGE_TYPES, 1), jnp.float32)
    bias_w = jnp.zeros((EDGE_TYPES, 1), jnp.float32)

    x = jax.random.uniform(k_x, (B, N, N), jnp.float32, 0.0, 5.0)
    edge_types = jax.random.randint(k_et, (B, N, N, T), 0, EDGE_TYPES, jnp.int32)

    out = gaussian_layer(x, edge_types, mul_w, bias_w, means_w, stds_w, K=K)
    out = jax.block_until_ready(out)

    ref = reference(x, edge_types, mul_w, bias_w, means_w, stds_w, K=K)
    np.testing.assert_allclose(np.asarray(out), np.asarray(ref), rtol=1e-5, atol=1e-6)
    assert out.shape == (B, N, N, K) and out.dtype == jnp.float32

    print("KERNEL_OK")
</pallas_src>

<mosaic_0001>
module attributes {stable_mosaic.version = 11 : i64} {
  func.func @gaussian_kernel(%arg0: i32, %arg1: memref<128x1xf32, #tpu.memory_space<vmem>>, %arg2: memref<1x128xf32, #tpu.memory_space<vmem>>, %arg3: memref<1x128xf32, #tpu.memory_space<vmem>>, %arg4: memref<1x128xf32, #tpu.memory_space<vmem>>, %arg5: memref<128x128xf32, #tpu.memory_space<vmem>>) attributes {dimension_semantics = [#tpu.dimension_semantics<parallel>], iteration_bounds = array<i64: 1>, scalar_prefetch = 0 : i64, scratch_operands = 0 : i64, tpu.core_type = #tpu.core_type<tc>, window_params = [{transform_indices = @transform_0, window_bounds = array<i64: 128, 1>}, {pipeline_mode = #tpu.pipeline_mode<synchronous>, transform_indices = @transform_1, window_bounds = array<i64: 1, 128>}, {pipeline_mode = #tpu.pipeline_mode<synchronous>, transform_indices = @transform_2, window_bounds = array<i64: 1, 128>}, {pipeline_mode = #tpu.pipeline_mode<synchronous>, transform_indices = @transform_3, window_bounds = array<i64: 1, 128>}, {transform_indices = @transform_4, window_bounds = array<i64: 128, 128>}]} {
    %c0 = arith.constant 0 : index
    %c0_0 = arith.constant 0 : index
    %0 = vector.load %arg1[%c0, %c0_0] : memref<128x1xf32, #tpu.memory_space<vmem>>, vector<128x1xf32>
    %c0_1 = arith.constant 0 : index
    %c0_2 = arith.constant 0 : index
    %1 = vector.load %arg2[%c0_1, %c0_2] : memref<1x128xf32, #tpu.memory_space<vmem>>, vector<1x128xf32>
    %2 = vector.broadcast %0 : vector<128x1xf32> to vector<128x128xf32>
    %3 = vector.broadcast %1 : vector<1x128xf32> to vector<128x128xf32>
    %4 = arith.subf %2, %3 : vector<128x128xf32>
    %c0_3 = arith.constant 0 : index
    %c0_4 = arith.constant 0 : index
    %5 = vector.load %arg3[%c0_3, %c0_4] : memref<1x128xf32, #tpu.memory_space<vmem>>, vector<1x128xf32>
    %6 = vector.broadcast %5 : vector<1x128xf32> to vector<128x128xf32>
    %7 = arith.mulf %4, %6 : vector<128x128xf32>
    %8 = arith.mulf %7, %7 : vector<128x128xf32>
    %cst = arith.constant 0.000000e+00 : f32
    %9 = vector.broadcast %cst : f32 to vector<128x128xf32>
    %10 = arith.subf %9, %8 : vector<128x128xf32>
    %11 = math.exp %10 : vector<128x128xf32>
    %c0_5 = arith.constant 0 : index
    %c0_6 = arith.constant 0 : index
    %12 = vector.load %arg4[%c0_5, %c0_6] : memref<1x128xf32, #tpu.memory_space<vmem>>, vector<1x128xf32>
    %13 = vector.broadcast %12 : vector<1x128xf32> to vector<128x128xf32>
    %14 = arith.mulf %11, %13 : vector<128x128xf32>
    %c0_7 = arith.constant 0 : index
    %c0_8 = arith.constant 0 : index
    %15 = vector.load %arg5[%c0_7, %c0_8] : memref<128x128xf32, #tpu.memory_space<vmem>>, vector<128x128xf32>
    tpu.vector_store %arg5[%c0_7, %c0_8], %14 {strides = array<i32>} : memref<128x128xf32, #tpu.memory_space<vmem>>, vector<128x128xf32>,
    return
  }
  func.func @transform_0(%arg0: i32) -> (i32, i32) {
    %c0_i32 = arith.constant 0 : i32
    %c0_i32_0 = arith.constant 0 : i32
    return %arg0, %c0_i32 : i32, i32
  }
  func.func @transform_1(%arg0: i32) -> (i32, i32) {
    %c0_i32 = arith.constant 0 : i32
    %c0_i32_0 = arith.constant 0 : i32
    %c0_i32_1 = arith.constant 0 : i32
    return %c0_i32, %c0_i32_0 : i32, i32
  }
  func.func @transform_2(%arg0: i32) -> (i32, i32) {
    %c0_i32 = arith.constant 0 : i32
    %c0_i32_0 = arith.constant 0 : i32
    %c0_i32_1 = arith.constant 0 : i32
    return %c0_i32, %c0_i32_0 : i32, i32
  }
  func.func @transform_3(%arg0: i32) -> (i32, i32) {
    %c0_i32 = arith.constant 0 : i32
    %c0_i32_0 = arith.constant 0 : i32
    %c0_i32_1 = arith.constant 0 : i32
    return %c0_i32, %c0_i32_0 : i32, i32
  }
  func.func @transform_4(%arg0: i32) -> (i32, i32) {
    %c0_i32 = arith.constant 0 : i32
    %c0_i32_0 = arith.constant 0 : i32
    return %arg0, %c0_i32 : i32, i32
  }
}

</mosaic_0001>

<llo_original>
// kernel: gaussian_layer.1
$region0: #{gaussian_layer.1}
  #allocation0 [shape = 'u32[]', space=smem, size = 0x4, offset = 0x4, fixed_abs, tag = 'smem constant byte address 0x4 - core index']
  #allocation1 [shape = 'u32[72,128]{1,0:T(1,128)}', space=vmem, size = 0x9000, scoped, tag = 'internal scratch']
  %s0 = inlined_call_operand.vmem [shape: f32[128,1], index: 0, kind: input, shape index: {}]
  %s1 = inlined_call_operand.vmem [shape: f32[1,128], index: 1, kind: input, shape index: {}]
  %s2 = inlined_call_operand.vmem [shape: f32[1,128], index: 2, kind: input, shape index: {}]
  %s3 = inlined_call_operand.vmem [shape: f32[1,128], index: 3, kind: input, shape index: {}]
  %s4 = inlined_call_operand.hbm [shape: f32[128,128], index: 4, kind: output, shape index: {}]
  %s5 = sld [smem:[#allocation0]]
  $region26: #{gaussian_layer.1} parent=0
    _
  %s7 = ssub.s32 1, %s5
  %s8 = scalar_select 0, %s7, %s5
  $region1: #{gaussian_layer.1} parent=0
    #allocation2 [shape = 'u8[65536]{0}', space=vmem, size = 0x10000, scoped, tag = 'output window, operand 0, single buffered']
    #allocation3 [shape = 's32[1]{0}', space=sflag, size = 0x4, scoped, tag = 'scoped memory for gaussian_layer.1']
    %9 = vsyncpa [#allocation3], 0
    // Predicated region
    $region2: #{gaussian_layer.1} parent=1 // pred_check
      _
    $region3: #{gaussian_layer.1} parent=1 // pred_check_branch
      %11 = sbr.rel (0) target = $region5
    $region4: #{gaussian_layer.1} parent=1 // pred_region
      _
    $region5: #{gaussian_layer.1} parent=1 // pred_fallthru
      _
    // Predicated region
    $region6: #{gaussian_layer.1} parent=1 // pred_check
      _
    $region7: #{gaussian_layer.1} parent=1 // pred_check_branch
      %13 = sbr.rel (0) target = $region9
    $region8: #{gaussian_layer.1} parent=1 // pred_region
      _
    $region9: #{gaussian_layer.1} parent=1 // pred_fallthru
      _
    // Predicated region
    $region10: #{gaussian_layer.1} parent=1 // pred_check
      _
    $region11: #{gaussian_layer.1} parent=1 // pred_check_branch
      %15 = sbr.rel (0) target = $region13
    $region12: #{gaussian_layer.1} parent=1 // pred_region
      _
    $region13: #{gaussian_layer.1} parent=1 // pred_fallthru
      _
    // Predicated region
    $region14: #{gaussian_layer.1} parent=1 // pred_check
      _
    $region15: #{gaussian_layer.1} parent=1 // pred_check_branch
      %17 = sbr.rel (0) target = $region17
    $region16: #{gaussian_layer.1} parent=1 // pred_region
      _
    $region17: #{gaussian_layer.1} parent=1 // pred_fallthru
      _
    %v18 = vld [vmem:[%s0] sm:$0xff]
    %v19 = vld [vmem:[%s0 + $0x8] sm:$0xff]
    %v20 = vld [vmem:[%s0 + $0x10] sm:$0xff]
    %v21 = vld [vmem:[%s0 + $0x18] sm:$0xff]
    %v22 = vld [vmem:[%s0 + $0x20] sm:$0xff]
    %v23 = vld [vmem:[%s0 + $0x28] sm:$0xff]
    %v24 = vld [vmem:[%s0 + $0x30] sm:$0xff]
    %v25 = vld [vmem:[%s0 + $0x38] sm:$0xff]
    %v26 = vld [vmem:[%s0 + $0x40] sm:$0xff]
    %v27 = vld [vmem:[%s0 + $0x48] sm:$0xff]
    %v28 = vld [vmem:[%s0 + $0x50] sm:$0xff]
    %v29 = vld [vmem:[%s0 + $0x58] sm:$0xff]
    %v30 = vld [vmem:[%s0 + $0x60] sm:$0xff]
    %v31 = vld [vmem:[%s0 + $0x68] sm:$0xff]
    %v32 = vld [vmem:[%s0 + $0x70] sm:$0xff]
    %v33 = vld [vmem:[%s0 + $0x78] sm:$0xff]
    %v34 = vld [vmem:[%s1] sm:$0x1]
    %36 = vset.pattern.permute.xlu0 0
    %37 = vperm.xlu0 %36, %v18
    %v38 = vpop.permute.xlu0 %37
    %41 = vset.pattern.permute.xlu0 0
    %42 = vperm.xlu0 %41, %v19
    %v43 = vpop.permute.xlu0 %42
    %46 = vset.pattern.permute.xlu0 0
    %47 = vperm.xlu0 %46, %v20
    %v48 = vpop.permute.xlu0 %47
    %51 = vset.pattern.permute.xlu0 0
    %52 = vperm.xlu0 %51, %v21
    %v53 = vpop.permute.xlu0 %52
    %56 = vset.pattern.permute.xlu0 0
    %57 = vperm.xlu0 %56, %v22
    %v58 = vpop.permute.xlu0 %57
    %61 = vset.pattern.permute.xlu0 0
    %62 = vperm.xlu0 %61, %v23
    %v63 = vpop.permute.xlu0 %62
    %66 = vset.pattern.permute.xlu0 0
    %67 = vperm.xlu0 %66, %v24
    %v68 = vpop.permute.xlu0 %67
    %71 = vset.pattern.permute.xlu0 0
    %72 = vperm.xlu0 %71, %v25
    %v73 = vpop.permute.xlu0 %72
    %76 = vset.pattern.permute.xlu0 0
    %77 = vperm.xlu0 %76, %v26
    %v78 = vpop.permute.xlu0 %77
    %81 = vset.pattern.permute.xlu0 0
    %82 = vperm.xlu0 %81, %v27
    %v83 = vpop.permute.xlu0 %82
    %86 = vset.pattern.permute.xlu0 0
    %87 = vperm.xlu0 %86, %v28
    %v88 = vpop.permute.xlu0 %87
    %91 = vset.pattern.permute.xlu0 0
    %92 = vperm.xlu0 %91, %v29
    %v93 = vpop.permute.xlu0 %92
    %96 = vset.pattern.permute.xlu0 0
    %97 = vperm.xlu0 %96, %v30
    %v98 = vpop.permute.xlu0 %97
    %101 = vset.pattern.permute.xlu0 0
    %102 = vperm.xlu0 %101, %v31
    %v103 = vpop.permute.xlu0 %102
    %106 = vset.pattern.permute.xlu0 0
    %107 = vperm.xlu0 %106, %v32
    %v108 = vpop.permute.xlu0 %107
    %111 = vset.pattern.permute.xlu0 0
    %112 = vperm.xlu0 %111, %v33
    %v113 = vpop.permute.xlu0 %112
    %v116 = vperm.slane %v34, 0
    %v118 = vsub.f32 %v38, %v116
    %v119 = vsub.f32 %v43, %v116
    %v120 = vsub.f32 %v48, %v116
    %v121 = vsub.f32 %v53, %v116
    %v122 = vsub.f32 %v58, %v116
    %v123 = vsub.f32 %v63, %v116
    %v124 = vsub.f32 %v68, %v116
    %v125 = vsub.f32 %v73, %v116
    %v126 = vsub.f32 %v78, %v116
    %v127 = vsub.f32 %v83, %v116
    %v128 = vsub.f32 %v88, %v116
    %v129 = vsub.f32 %v93, %v116
    %v130 = vsub.f32 %v98, %v116
    %v131 = vsub.f32 %v103, %v116
    %v132 = vsub.f32 %v108, %v116
    %v133 = vsub.f32 %v113, %v116
    %v134 = vld [vmem:[%s2] sm:$0x1]
    %v136 = vperm.slane %v134, 0
    %v138 = vmul.f32 %v118, %v136
    %v139 = vmul.f32 %v119, %v136
    %v140 = vmul.f32 %v120, %v136
    %v141 = vmul.f32 %v121, %v136
    %v142 = vmul.f32 %v122, %v136
    %v143 = vmul.f32 %v123, %v136
    %v144 = vmul.f32 %v124, %v136
    %v145 = vmul.f32 %v125, %v136
    %v146 = vmul.f32 %v126, %v136
    %v147 = vmul.f32 %v127, %v136
    %v148 = vmul.f32 %v128, %v136
    %v149 = vmul.f32 %v129, %v136
    %v150 = vmul.f32 %v130, %v136
    %v151 = vmul.f32 %v131, %v136
    %v152 = vmul.f32 %v132, %v136
    %v153 = vmul.f32 %v133, %v136
    %v154 = vmul.f32 %v138, %v138
    %v155 = vmul.f32 %v139, %v139
    %v156 = vmul.f32 %v140, %v140
    %v157 = vmul.f32 %v141, %v141
    %v158 = vmul.f32 %v142, %v142
    %v159 = vmul.f32 %v143, %v143
    %v160 = vmul.f32 %v144, %v144
    %v161 = vmul.f32 %v145, %v145
    %v162 = vmul.f32 %v146, %v146
    %v163 = vmul.f32 %v147, %v147
    %v164 = vmul.f32 %v148, %v148
    %v165 = vmul.f32 %v149, %v149
    %v166 = vmul.f32 %v150, %v150
    %v167 = vmul.f32 %v151, %v151
    %v168 = vmul.f32 %v152, %v152
    %v169 = vmul.f32 %v153, %v153
    %v170 = vsub.f32 0.0, %v154
    %v171 = vsub.f32 0.0, %v155
    %v172 = vsub.f32 0.0, %v156
    %v173 = vsub.f32 0.0, %v157
    %v174 = vsub.f32 0.0, %v158
    %v175 = vsub.f32 0.0, %v159
    %v176 = vsub.f32 0.0, %v160
    %v177 = vsub.f32 0.0, %v161
    %v178 = vsub.f32 0.0, %v162
    %v179 = vsub.f32 0.0, %v163
    %v180 = vsub.f32 0.0, %v164
    %v181 = vsub.f32 0.0, %v165
    %v182 = vsub.f32 0.0, %v166
    %v183 = vsub.f32 0.0, %v167
    %v184 = vsub.f32 0.0, %v168
    %v185 = vsub.f32 0.0, %v169
    %v186 = vmul.f32 %v170, 1.442695
    %v187 = vpow.pop %v186
    %v188 = vmul.f32 %v171, 1.442695
    %v189 = vpow.pop %v188
    %v190 = vmul.f32 %v172, 1.442695
    %v191 = vpow.pop %v190
    %v192 = vmul.f32 %v173, 1.442695
    %v193 = vpow.pop %v192
    %v194 = vmul.f32 %v174, 1.442695
    %v195 = vpow.pop %v194
    %v196 = vmul.f32 %v175, 1.442695
    %v197 = vpow.pop %v196
    %v198 = vmul.f32 %v176, 1.442695
    %v199 = vpow.pop %v198
    %v200 = vmul.f32 %v177, 1.442695
    %v201 = vpow.pop %v200
    %v202 = vmul.f32 %v178, 1.442695
    %v203 = vpow.pop %v202
    %v204 = vmul.f32 %v179, 1.442695
    %v205 = vpow.pop %v204
    %v206 = vmul.f32 %v180, 1.442695
    %v207 = vpow.pop %v206
    %v208 = vmul.f32 %v181, 1.442695
    %v209 = vpow.pop %v208
    %v210 = vmul.f32 %v182, 1.442695
    %v211 = vpow.pop %v210
    %v212 = vmul.f32 %v183, 1.442695
    %v213 = vpow.pop %v212
    %v214 = vmul.f32 %v184, 1.442695
    %v215 = vpow.pop %v214
    %v216 = vmul.f32 %v185, 1.442695
    %v217 = vpow.pop %v216
    %v218 = vld [vmem:[%s3] sm:$0x1]
    %v220 = vperm.slane %v218, 0
    %v222 = vmul.f32 %v187, %v220
    %v223 = vmul.f32 %v189, %v220
    %v224 = vmul.f32 %v191, %v220
    %v225 = vmul.f32 %v193, %v220
    %v226 = vmul.f32 %v195, %v220
    %v227 = vmul.f32 %v197, %v220
    %v228 = vmul.f32 %v199, %v220
    %v229 = vmul.f32 %v201, %v220
    %v230 = vmul.f32 %v203, %v220
    %v231 = vmul.f32 %v205, %v220
    %v232 = vmul.f32 %v207, %v220
    %v233 = vmul.f32 %v209, %v220
    %v234 = vmul.f32 %v211, %v220
    %v235 = vmul.f32 %v213, %v220
    %v236 = vmul.f32 %v215, %v220
    %v237 = vmul.f32 %v217, %v220
    %238 = vst [vmem:[#allocation2] sm:$0xff] %v222
    %239 = vst [vmem:[#allocation2 + $0x8] sm:$0xff] %v223
    %240 = vst [vmem:[#allocation2 + $0x10] sm:$0xff] %v224
    %241 = vst [vmem:[#allocation2 + $0x18] sm:$0xff] %v225
    %242 = vst [vmem:[#allocation2 + $0x20] sm:$0xff] %v226
    %243 = vst [vmem:[#allocation2 + $0x28] sm:$0xff] %v227
    %244 = vst [vmem:[#allocation2 + $0x30] sm:$0xff] %v228
    %245 = vst [vmem:[#allocation2 + $0x38] sm:$0xff] %v229
    %246 = vst [vmem:[#allocation2 + $0x40] sm:$0xff] %v230
    %247 = vst [vmem:[#allocation2 + $0x48] sm:$0xff] %v231
    %248 = vst [vmem:[#allocation2 + $0x50] sm:$0xff] %v232
    %249 = vst [vmem:[#allocation2 + $0x58] sm:$0xff] %v233
    %250 = vst [vmem:[#allocation2 + $0x60] sm:$0xff] %v234
    %251 = vst [vmem:[#allocation2 + $0x68] sm:$0xff] %v235
    %252 = vst [vmem:[#allocation2 + $0x70] sm:$0xff] %v236
    %253 = vst [vmem:[#allocation2 + $0x78] sm:$0xff] %v237
    // Predicated region
    $region18: #{gaussian_layer.1} parent=1 // pred_check
      _
    $region19: #{gaussian_layer.1} parent=1 // pred_check_branch
      %255 = sbr.rel (0) target = $region21
    $region20: #{gaussian_layer.1} parent=1 // pred_region
      %257 = vsyncadd [#allocation3], 0
      %s258 = sshll.u32 [#allocation2], 4
      %s259 = int_to_ptr.vmem [resolvable:$true] %s258
      %s260 = sshll.u32 %s4, 4
      %s261 = int_to_ptr.hbm [resolvable:$true] %s260
      %266 = dma.vmem_to_hbm [thread:$0]  %s259, 2048, %s261, [#allocation3], 128, 128, 8
    $region21: #{gaussian_layer.1} parent=1 // pred_fallthru
      _
    // Predicated region
    $region22: #{gaussian_layer.1} parent=1 // pred_check
      _
    $region23: #{gaussian_layer.1} parent=1 // pred_check_branch
      %268 = sbr.rel (0) target = $region25
    $region24: #{gaussian_layer.1} parent=1 // pred_region
      %270 = dma.done [#allocation3], 2048
    $region25: #{gaussian_layer.1} parent=1 // pred_fallthru
      _
    %271 = vsyncpa [#allocation3], 1

</llo_original>
